<compile_context>
chip_gen: v6e
topology: v6e:2x2x1
jax: 0.10.0
libtpu: 0.0.40
codegen_flags: <defaults>
</compile_context>

<pallas_src>
import functools

import jax
import jax.numpy as jnp
from jax.experimental import pallas as pl
from jax.experimental.pallas import tpu as pltpu

T_DISTILL = 4.0  # temperature from JS_Divergence_Loss(T=4.0)


def _round_up(x, m):
    return ((x + m - 1) // m) * m


def _js_divergence_kernel(p_ref, q_ref, partial_ref, *, total_rows, tile_rows,
                          needs_mask):
    # p_ref, q_ref: (tile_rows, C) logits tile in VMEM.
    # partial_ref:  (1, 8, 128) f32 VMEM; per-tile partial sum stored at [0,0,0].
    inv_t = 1.0 / T_DISTILL
    pt = p_ref[...].astype(jnp.float32) * inv_t      # p / T
    qt = q_ref[...].astype(jnp.float32) * inv_t      # q / T
    mt = 0.5 * (pt + qt)                             # m / T

    def row_lse(x):
        mx = jnp.max(x, axis=1, keepdims=True)
        return mx + jnp.log(jnp.sum(jnp.exp(x - mx), axis=1, keepdims=True))

    # Per-row JS integrand (before the 0.5 * T^2 / B scaling):
    #   sum_c softmax(m/T) * (2*log_softmax(m/T) - log_softmax(p/T) - log_softmax(q/T))
    #   == LSE(p/T) + LSE(q/T) - 2*LSE(m/T)     (the logit terms cancel exactly,
    #   and softmax(m/T) sums to 1 per row).
    r = row_lse(pt) + row_lse(qt) - 2.0 * row_lse(mt)   # (tile_rows, 1)

    if needs_mask:
        # Ragged last batch tile: zero the pad rows on the per-row result.
        # The select also guarantees NaN/Inf from stale pad-row data never leaks.
        base = pl.program_id(0) * tile_rows
        rid = jax.lax.broadcasted_iota(jnp.int32, r.shape, 0)
        r = jnp.where(base + rid < total_rows, r, 0.0)

    # Tiny (tile_rows, 1) reduce + lane-dense unmasked (8,128) store.
    partial = jnp.sum(r)
    rows = jax.lax.broadcasted_iota(jnp.int32, (8, 128), 0)
    cols = jax.lax.broadcasted_iota(jnp.int32, (8, 128), 1)
    partial_ref[...] = jnp.where((rows == 0) & (cols == 0), partial, 0.0)[None]


def _choose_tile_rows(B, C, itemsize):
    """Batch-tile rows: ~2 MiB (f32-equivalent) per input tile, >= 2 grid steps."""
    del itemsize  # target is expressed in f32-equivalent bytes
    if B < 16:
        # Single block equal to the full batch dim (legal for any B, no mask).
        return B
    target_f32_bytes = 2 * 1024 * 1024
    tb = (target_f32_bytes // max(1, C * 4)) // 8 * 8
    tb = max(8, tb)
    # Keep at least 2 grid steps so both v7x TensorCores participate
    # (dimension_semantics=("parallel",) shards the grid axis across cores).
    max_tb = _round_up(pl.cdiv(B, 2), 8)
    return min(tb, max_tb)


def js_divergence_loss(js_p, js_q, *, block_rows=None):
    """JS divergence distillation loss. js_p, js_q: [B, C] logits. Returns scalar f32."""
    assert js_p.shape == js_q.shape and js_p.ndim == 2
    B, C = js_p.shape
    itemsize = jnp.dtype(js_p.dtype).itemsize

    tb = block_rows if block_rows is not None else _choose_tile_rows(B, C, itemsize)
    tb = min(tb, _round_up(B, 8)) if tb >= 8 else B
    num_tiles = pl.cdiv(B, tb)
    needs_mask = (B % tb) != 0

    kernel = functools.partial(
        _js_divergence_kernel,
        total_rows=B, tile_rows=tb, needs_mask=needs_mask)

    # Generation-aware-ish VMEM budget: 2 inputs x 2 pipeline buffers + a few
    # live f32 tile temporaries + the small output tiles; capped at 48 MiB so it
    # always fits v7x's 64 MiB physical VMEM.
    tile_in_bytes = tb * C * itemsize
    tile_f32_bytes = tb * C * 4
    vmem_need = 2 * 2 * tile_in_bytes + 5 * tile_f32_bytes + 2 * 8 * 128 * 4
    vmem_limit = int(min(max(vmem_need + (4 << 20), 16 << 20), 48 << 20))

    cost = pl.CostEstimate(
        flops=10 * B * C,
        transcendentals=3 * B * C,
        bytes_accessed=2 * B * C * itemsize + num_tiles * 8 * 128 * 4,
    )

    partials = pl.pallas_call(
        kernel,
        out_shape=jax.ShapeDtypeStruct((num_tiles, 8, 128), jnp.float32),
        grid_spec=pltpu.PrefetchScalarGridSpec(
            num_scalar_prefetch=0,
            grid=(num_tiles,),
            in_specs=[
                pl.BlockSpec((tb, C), lambda i: (i, 0)),
                pl.BlockSpec((tb, C), lambda i: (i, 0)),
            ],
            out_specs=pl.BlockSpec((1, 8, 128), lambda i: (i, 0, 0)),
        ),
        compiler_params=pltpu.CompilerParams(
            dimension_semantics=("parallel",),
            vmem_limit_bytes=vmem_limit,
        ),
        cost_estimate=cost,
    )(js_p, js_q)

    # loss = 0.5 * (T^2 / B) * sum_rows( LSE(p/T) + LSE(q/T) - 2*LSE(m/T) )
    scale = 0.5 * (T_DISTILL * T_DISTILL) / B
    return jnp.sum(partials) * scale


def _reference_js_divergence(js_p, js_q):
    # Pure-JAX reference replicating the PyTorch semantics, for sanity checking.
    T = T_DISTILL
    B = js_p.shape[0]
    m = 0.5 * (js_p + js_q)

    def distill_kl(y_s, y_t):
        log_s = jax.nn.log_softmax(y_s / T, axis=1)
        prob_t = jax.nn.softmax(y_t / T, axis=1)
        return jnp.sum(prob_t * (jnp.log(prob_t) - log_s)) * (T ** 2) / B

    return 0.5 * distill_kl(js_p, m) + 0.5 * distill_kl(js_q, m)


if __name__ == "__main__":
    key = jax.random.PRNGKey(0)
    kp, kq = jax.random.split(key)

    # Small [batch, num_classes] logits, consistent with the PyTorch module.
    B, C = 8, 32
    js_p = jax.random.normal(kp, (B, C), dtype=jnp.float32) * 2.0
    js_q = jax.random.normal(kq, (B, C), dtype=jnp.float32) * 2.0

    loss = jax.block_until_ready(jax.jit(js_divergence_loss)(js_p, js_q))
    ref = _reference_js_divergence(js_p, js_q)
    assert jnp.allclose(loss, ref, rtol=1e-5, atol=1e-5), (loss, ref)

    # Multi-tile + ragged-batch path (exercises the grid and the per-row mask).
    kp2, kq2 = jax.random.split(jax.random.PRNGKey(1))
    B2, C2 = 37, 160
    p2 = jax.random.normal(kp2, (B2, C2), dtype=jnp.float32) * 3.0
    q2 = jax.random.normal(kq2, (B2, C2), dtype=jnp.float32) * 3.0
    loss2 = jax.block_until_ready(
        jax.jit(lambda a, b: js_divergence_loss(a, b, block_rows=16))(p2, q2))
    ref2 = _reference_js_divergence(p2, q2)
    assert jnp.allclose(loss2, ref2, rtol=1e-5, atol=1e-5), (loss2, ref2)

    # bf16 logits path (auto tile choice, 2 tiles, ragged mask).
    kp3, kq3 = jax.random.split(jax.random.PRNGKey(2))
    B3, C3 = 24, 96
    p3 = (jax.random.normal(kp3, (B3, C3), dtype=jnp.float32) * 2.0).astype(jnp.bfloat16)
    q3 = (jax.random.normal(kq3, (B3, C3), dtype=jnp.float32) * 2.0).astype(jnp.bfloat16)
    loss3 = jax.block_until_ready(jax.jit(js_divergence_loss)(p3, q3))
    ref3 = _reference_js_divergence(p3.astype(jnp.float32), q3.astype(jnp.float32))
    assert jnp.allclose(loss3, ref3, rtol=1e-4, atol=1e-4), (loss3, ref3)

    print("KERNEL_OK")
</pallas_src>

<mosaic_0001>
module attributes {stable_mosaic.version = 11 : i64} {
  func.func @_js_divergence_kernel(%arg0: i32, %arg1: memref<8x32xf32, #tpu.memory_space<vmem>>, %arg2: memref<8x32xf32, #tpu.memory_space<vmem>>, %arg3: memref<1x8x128xf32, #tpu.memory_space<vmem>>) attributes {dimension_semantics = [#tpu.dimension_semantics<parallel>], iteration_bounds = array<i64: 1>, scalar_prefetch = 0 : i64, scratch_operands = 0 : i64, tpu.core_type = #tpu.core_type<tc>, window_params = [{transform_indices = @transform_0, window_bounds = array<i64: 8, 32>}, {transform_indices = @transform_1, window_bounds = array<i64: 8, 32>}, {transform_indices = @transform_2, window_bounds = array<i64: 1, 8, 128>}]} {
    %c0 = arith.constant 0 : index
    %c0_0 = arith.constant 0 : index
    %0 = vector.load %arg1[%c0, %c0_0] : memref<8x32xf32, #tpu.memory_space<vmem>>, vector<8x32xf32>
    %cst = arith.constant 2.500000e-01 : f32
    %1 = vector.broadcast %cst : f32 to vector<8x32xf32>
    %2 = arith.mulf %0, %1 : vector<8x32xf32>
    %c0_1 = arith.constant 0 : index
    %c0_2 = arith.constant 0 : index
    %3 = vector.load %arg2[%c0_1, %c0_2] : memref<8x32xf32, #tpu.memory_space<vmem>>, vector<8x32xf32>
    %cst_3 = arith.constant 2.500000e-01 : f32
    %4 = vector.broadcast %cst_3 : f32 to vector<8x32xf32>
    %5 = arith.mulf %3, %4 : vector<8x32xf32>
    %6 = arith.addf %2, %5 : vector<8x32xf32>
    %cst_4 = arith.constant 5.000000e-01 : f32
    %7 = vector.broadcast %cst_4 : f32 to vector<8x32xf32>
    %8 = arith.mulf %7, %6 : vector<8x32xf32>
    %cst_5 = arith.constant dense<0xFF800000> : vector<8xf32>
    %9 = vector.multi_reduction <maximumf>, %2, %cst_5 [1] : vector<8x32xf32> to vector<8xf32>
    %10 = vector.shape_cast %9 : vector<8xf32> to vector<8x1xf32>
    %11 = vector.broadcast %10 : vector<8x1xf32> to vector<8x32xf32>
    %12 = arith.subf %2, %11 : vector<8x32xf32>
    %13 = math.exp %12 : vector<8x32xf32>
    %cst_6 = arith.constant dense<0.000000e+00> : vector<8xf32>
    %14 = vector.multi_reduction <add>, %13, %cst_6 [1] : vector<8x32xf32> to vector<8xf32>
    %15 = vector.shape_cast %14 : vector<8xf32> to vector<8x1xf32>
    %16 = math.log %15 : vector<8x1xf32>
    %17 = arith.addf %10, %16 : vector<8x1xf32>
    %cst_7 = arith.constant dense<0xFF800000> : vector<8xf32>
    %18 = vector.multi_reduction <maximumf>, %5, %cst_7 [1] : vector<8x32xf32> to vector<8xf32>
    %19 = vector.shape_cast %18 : vector<8xf32> to vector<8x1xf32>
    %20 = vector.broadcast %19 : vector<8x1xf32> to vector<8x32xf32>
    %21 = arith.subf %5, %20 : vector<8x32xf32>
    %22 = math.exp %21 : vector<8x32xf32>
    %cst_8 = arith.constant dense<0.000000e+00> : vector<8xf32>
    %23 = vector.multi_reduction <add>, %22, %cst_8 [1] : vector<8x32xf32> to vector<8xf32>
    %24 = vector.shape_cast %23 : vector<8xf32> to vector<8x1xf32>
    %25 = math.log %24 : vector<8x1xf32>
    %26 = arith.addf %19, %25 : vector<8x1xf32>
    %27 = arith.addf %17, %26 : vector<8x1xf32>
    %cst_9 = arith.constant dense<0xFF800000> : vector<8xf32>
    %28 = vector.multi_reduction <maximumf>, %8, %cst_9 [1] : vector<8x32xf32> to vector<8xf32>
    %29 = vector.shape_cast %28 : vector<8xf32> to vector<8x1xf32>
    %30 = vector.broadcast %29 : vector<8x1xf32> to vector<8x32xf32>
    %31 = arith.subf %8, %30 : vector<8x32xf32>
    %32 = math.exp %31 : vector<8x32xf32>
    %cst_10 = arith.constant dense<0.000000e+00> : vector<8xf32>
    %33 = vector.multi_reduction <add>, %32, %cst_10 [1] : vector<8x32xf32> to vector<8xf32>
    %34 = vector.shape_cast %33 : vector<8xf32> to vector<8x1xf32>
    %35 = math.log %34 : vector<8x1xf32>
    %36 = arith.addf %29, %35 : vector<8x1xf32>
    %cst_11 = arith.constant 2.000000e+00 : f32
    %37 = vector.broadcast %cst_11 : f32 to vector<8x1xf32>
    %38 = arith.mulf %37, %36 : vector<8x1xf32>
    %39 = arith.subf %27, %38 : vector<8x1xf32>
    %40 = vector.shape_cast %39 : vector<8x1xf32> to vector<1x8x1xf32>
    %cst_12 = arith.constant dense<0.000000e+00> : vector<1xf32>
    %41 = vector.multi_reduction <add>, %40, %cst_12 [1, 2] : vector<1x8x1xf32> to vector<1xf32>
    %42 = vector.shape_cast %41 : vector<1xf32> to vector<1x1x1xf32>
    %43 = vector.extract %42[0, 0, 0] : f32 from vector<1x1x1xf32>
    %44 = tpu.iota {dimensions = array<i32: 0>} : vector<8x128xi32>
    %45 = tpu.iota {dimensions = array<i32: 1>} : vector<8x128xi32>
    %c0_i32 = arith.constant 0 : i32
    %46 = vector.broadcast %c0_i32 : i32 to vector<8x128xi32>
    %47 = arith.cmpi eq, %44, %46 : vector<8x128xi32>
    %c0_i32_13 = arith.constant 0 : i32
    %48 = vector.broadcast %c0_i32_13 : i32 to vector<8x128xi32>
    %49 = arith.cmpi eq, %45, %48 : vector<8x128xi32>
    %50 = arith.andi %47, %49 : vector<8x128xi1>
    %cst_14 = arith.constant 0.000000e+00 : f32
    %51 = vector.broadcast %43 : f32 to vector<8x128xf32>
    %52 = vector.broadcast %cst_14 : f32 to vector<8x128xf32>
    %53 = arith.select %50, %51, %52 : vector<8x128xi1>, vector<8x128xf32>
    %54 = vector.shape_cast %53 : vector<8x128xf32> to vector<1x8x128xf32>
    %c0_15 = arith.constant 0 : index
    %c0_16 = arith.constant 0 : index
    %c0_17 = arith.constant 0 : index
    %55 = vector.load %arg3[%c0_15, %c0_16, %c0_17] : memref<1x8x128xf32, #tpu.memory_space<vmem>>, vector<1x8x128xf32>
    tpu.vector_store %arg3[%c0_15, %c0_16, %c0_17], %54 {strides = array<i32>} : memref<1x8x128xf32, #tpu.memory_space<vmem>>, vector<1x8x128xf32>,
    return
  }
  func.func @transform_0(%arg0: i32) -> (i32, i32) {
    %c0_i32 = arith.constant 0 : i32
    %c0_i32_0 = arith.constant 0 : i32
    return %arg0, %c0_i32 : i32, i32
  }
  func.func @transform_1(%arg0: i32) -> (i32, i32) {
    %c0_i32 = arith.constant 0 : i32
    %c0_i32_0 = arith.constant 0 : i32
    return %arg0, %c0_i32 : i32, i32
  }
  func.func @transform_2(%arg0: i32) -> (i32, i32, i32) {
    %c0_i32 = arith.constant 0 : i32
    %c0_i32_0 = arith.constant 0 : i32
    %c0_i32_1 = arith.constant 0 : i32
    return %arg0, %c0_i32, %c0_i32_0 : i32, i32, i32
  }
}

</mosaic_0001>

<llo_original>
// kernel: js_divergence_loss.1
$region0: #{js_divergence_loss.1}
  #allocation0 [shape = 'u32[]', space=smem, size = 0x4, offset = 0x4, fixed_abs, tag = 'smem constant byte address 0x4 - core index']
  #allocation1 [shape = 'u32[144,128]{1,0:T(1,128)}', space=vmem, size = 0x12000, scoped, tag = 'internal scratch']
  %s0 = inlined_call_operand.hbm [shape: f32[8,32], index: 0, kind: input, shape index: {}]
  %s1 = inlined_call_operand.hbm [shape: f32[8,32], index: 1, kind: input, shape index: {}]
  %s2 = inlined_call_operand.vmem [shape: f32[1,8,128], index: 2, kind: output, shape index: {}]
  %s3 = sld [smem:[#allocation0]]
  $region26: #{js_divergence_loss.1} parent=0
    _
  %s5 = ssub.s32 1, %s3
  %s6 = scalar_select 0, %s5, %s3
  $region1: #{js_divergence_loss.1} parent=0
    #allocation2 [shape = 'u8[4096]{0}', space=vmem, size = 0x1000, scoped, tag = 'input window, operand 0, single buffered']
    #allocation3 [shape = 's32[1]{0}', space=sflag, size = 0x4, scoped, tag = 'scoped memory for js_divergence_loss.1']
    #allocation4 [shape = 'u8[4096]{0}', space=vmem, size = 0x1000, scoped, tag = 'input window, operand 1, single buffered']
    #allocation5 [shape = 's32[1]{0}', space=sflag, size = 0x4, scoped, tag = 'scoped memory for js_divergence_loss.1']
    %7 = vsyncpa [#allocation3], 0
    %8 = vsyncpa [#allocation5], 0
    // Predicated region
    $region2: #{js_divergence_loss.1} parent=1 // pred_check
      _
    $region3: #{js_divergence_loss.1} parent=1 // pred_check_branch
      %10 = sbr.rel (0) target = $region5
    $region4: #{js_divergence_loss.1} parent=1 // pred_region
      %s12 = ssub.s32 128, 128
      %13 = vsyncadd [#allocation3], %s12
      %s15 = sshll.u32 [#allocation2], 4
      %s16 = int_to_ptr.vmem [resolvable:$true] %s15
      %18 = dma.hbm_to_vmem [thread:$0]  %s0, 128, %s16, [#allocation3]
    $region5: #{js_divergence_loss.1} parent=1 // pred_fallthru
      _
    // Predicated region
    $region6: #{js_divergence_loss.1} parent=1 // pred_check
      _
    $region7: #{js_divergence_loss.1} parent=1 // pred_check_branch
      %20 = sbr.rel (0) target = $region9
    $region8: #{js_divergence_loss.1} parent=1 // pred_region
      %s22 = ssub.s32 128, 128
      %23 = vsyncadd [#allocation5], %s22
      %s25 = sshll.u32 [#allocation4], 4
      %s26 = int_to_ptr.vmem [resolvable:$true] %s25
      %28 = dma.hbm_to_vmem [thread:$0]  %s1, 128, %s26, [#allocation5]
    $region9: #{js_divergence_loss.1} parent=1 // pred_fallthru
      _
    // Predicated region
    $region10: #{js_divergence_loss.1} parent=1 // pred_check
      _
    $region11: #{js_divergence_loss.1} parent=1 // pred_check_branch
      %30 = sbr.rel (0) target = $region13
    $region12: #{js_divergence_loss.1} parent=1 // pred_region
      %31 = dma.done [#allocation3], 128
    $region13: #{js_divergence_loss.1} parent=1 // pred_fallthru
      _
    // Predicated region
    $region14: #{js_divergence_loss.1} parent=1 // pred_check
      _
    $region15: #{js_divergence_loss.1} parent=1 // pred_check_branch
      %33 = sbr.rel (0) target = $region17
    $region16: #{js_divergence_loss.1} parent=1 // pred_region
      %34 = dma.done [#allocation5], 128
    $region17: #{js_divergence_loss.1} parent=1 // pred_fallthru
      _
    %v35 = vld [vmem:[#allocation2] sm:$0xff]
    %v36 = vmul.f32 %v35, 0.25
    %v37 = vld [vmem:[#allocation4] sm:$0xff]
    %v38 = vmul.f32 %v37, 0.25
    %v39 = vadd.f32 %v36, %v38
    %v40 = vmul.f32 %v39, 0.5
    %vm41 = vcmask 261120
    %v42 = vsel %vm41, %v36, -inf
    %43 = vmax.xlane.f32.xlu0 %v42
    %v44 = vpop.xlane.xlu0 %43
    %v45 = vsub.f32 %v36, %v44
    %v46 = vmul.f32 %v45, 1.442695
    %v47 = vpow.pop %v46
    %v48 = vsel %vm41, %v47, 0.0
    %49 = vadd.xlane.f32.xlu0 %v48
    %v50 = vpop.xlane.xlu0 %49
    %v51 = vlog2.pop %v50
    %v52 = vmul.f32 %v51, 0.6931472
    %v53 = vadd.f32 %v44, %v52
    %v54 = vsel %vm41, %v38, -inf
    %55 = vmax.xlane.f32.xlu0 %v54
    %v56 = vpop.xlane.xlu0 %55
    %v57 = vsub.f32 %v38, %v56
    %v58 = vmul.f32 %v57, 1.442695
    %v59 = vpow.pop %v58
    %v60 = vsel %vm41, %v59, 0.0
    %61 = vadd.xlane.f32.xlu0 %v60
    %v62 = vpop.xlane.xlu0 %61
    %v63 = vlog2.pop %v62
    %v64 = vmul.f32 %v63, 0.6931472
    %v65 = vadd.f32 %v56, %v64
    %v66 = vadd.f32 %v53, %v65
    %v67 = vsel %vm41, %v40, -inf
    %68 = vmax.xlane.f32.xlu0 %v67
    %v69 = vpop.xlane.xlu0 %68
    %v70 = vsub.f32 %v40, %v69
    %v71 = vmul.f32 %v70, 1.442695
    %v72 = vpow.pop %v71
    %v73 = vsel %vm41, %v72, 0.0
    %74 = vadd.xlane.f32.xlu0 %v73
    %v75 = vpop.xlane.xlu0 %74
    %v76 = vlog2.pop %v75
    %v77 = vmul.f32 %v76, 0.6931472
    %v78 = vadd.f32 %v69, %v77
    %v79 = vmul.f32 %v78, 2.0
    %v80 = vsub.f32 %v66, %v79
    %vm81 = vcmask 7168
    %v82 = vsel %vm81, %v80, 0.0
    %83 = vadd.xlane.f32.xlu0 %v82
    %v84 = vpop.xlane.xlu0 %83
    %v85 = vrot.slane %v84, 4
    %v86 = vadd.f32 %v84, %v85
    %v87 = vrot.slane %v86, 2
    %v88 = vadd.f32 %v86, %v87
    %v89 = vrot.slane %v88, 1
    %v90 = vadd.f32 %v88, %v89
    %s91 = vtos %v90
    %v92 = vlaneseq
    %v93 = vshrl.u32 %v92, 7
    %v94 = vlaneseq
    %v95 = vand.u32 %v94, 127
    %vm96 = vcmp.eq.s32.totalorder %v93, 0
    %vm97 = vcmp.eq.s32.totalorder %v95, 0
    %vm98 = vmand %vm96, %vm97
    %v99 = vstv %s91
    %v100 = vsel %vm98, %v99, 0.0
    %101 = vst [vmem:[%s2] sm:$0xff] %v100
    // Predicated region
    $region18: #{js_divergence_loss.1} parent=1 // pred_check
      _
    $region19: #{js_divergence_loss.1} parent=1 // pred_check_branch
      %103 = sbr.rel (0) target = $region21
    $region20: #{js_divergence_loss.1} parent=1 // pred_region
      _
    $region21: #{js_divergence_loss.1} parent=1 // pred_fallthru
      _
    // Predicated region
    $region22: #{js_divergence_loss.1} parent=1 // pred_check
      _
    $region23: #{js_divergence_loss.1} parent=1 // pred_check_branch
      %105 = sbr.rel (0) target = $region25
    $region24: #{js_divergence_loss.1} parent=1 // pred_region
      _
    $region25: #{js_divergence_loss.1} parent=1 // pred_fallthru
      _
    %106 = vsyncpa [#allocation3], 1
    %107 = vsyncpa [#allocation5], 1

</llo_original>
